<compile_context>
chip_gen: v7x
topology: tpu7x:2x2x1
jax: 0.10.0
libtpu: 0.0.40
codegen_flags: <defaults>
</compile_context>

<pallas_src>
import jax
import jax.numpy as jnp
from jax.experimental import pallas as pl
from jax.experimental.pallas import tpu as pltpu


def _masked_ce_kernel(mti_ref, pred_ref, mgt_ref, ugt_ref, sum_ref, cnt_ref):
    # Grid = (parallel row-chunks, sequential tiles within a chunk).
    i = pl.program_id(1)

    # Outputs are VMEM-resident across the inner ("arbitrary") axis because
    # their block index only depends on the outer axis -> classic accumulator.
    @pl.when(i == 0)
    def _():
        sum_ref[...] = jnp.zeros_like(sum_ref)
        cnt_ref[...] = jnp.zeros_like(cnt_ref)

    logits = pred_ref[...].astype(jnp.float32)              # (TM, C)
    mgt = mgt_ref[...]                                       # (TM, 1) int32
    ugt = ugt_ref[...]                                       # (TM, 1) int32

    valid = (mgt == mti_ref[0]).astype(jnp.float32)          # (TM, 1)

    # Numerically-stable log-softmax pieces, reusing `shifted` for the gather.
    m = jnp.max(logits, axis=-1, keepdims=True)              # (TM, 1)
    shifted = logits - m                                     # (TM, C)
    lse_minus_m = jnp.log(jnp.sum(jnp.exp(shifted), axis=-1, keepdims=True))

    # Gather shifted[row, label[row]] via lane-iota compare + masked lane-sum.
    col = jax.lax.broadcasted_iota(jnp.int32, logits.shape, 1)
    picked_shifted = jnp.sum(jnp.where(col == ugt, shifted, 0.0),
                             axis=-1, keepdims=True)         # (TM, 1)

    # lse - picked == (lse - m) - (picked - m)
    per_row_loss = lse_minus_m - picked_shifted              # (TM, 1)

    # Deferred reduction: accumulate per-row, collapse to scalar in JAX glue.
    sum_ref[...] += per_row_loss * valid
    cnt_ref[...] += valid


def masked_cross_entropy_loss(predictions, masked_ground_truth,
                              unmasked_ground_truth, *,
                              mask_token_index, num_parallel=2, tile_m=None):
    """predictions: (B, N, C) float; ground truths: (B, N) int."""
    B, N, C = predictions.shape
    M = B * N
    itemsize = jnp.dtype(predictions.dtype).itemsize
    # Sub-32-bit inputs pack along sublanes -> coarser row alignment.
    align = {4: 8, 2: 16, 1: 32}.get(itemsize, 8)

    # ---- tile sizing: budget ~6 MiB of f32 logits per tile ----
    if tile_m is None:
        tile_m = (6 * 1024 * 1024) // (C * 4)
        tile_m = int(max(align, min(1024, (tile_m // align) * align)))
    # Don't over-pad tiny inputs: shrink to what one parallel chunk needs.
    rows_per_chunk = -(-M // num_parallel)
    tile_m = int(min(tile_m, max(align, -(-rows_per_chunk // align) * align)))
    num_chunks = -(-rows_per_chunk // tile_m)
    M_pad = num_parallel * num_chunks * tile_m

    pred2d = predictions.reshape(M, C)
    mgt2d = masked_ground_truth.reshape(M, 1).astype(jnp.int32)
    ugt2d = unmasked_ground_truth.reshape(M, 1).astype(jnp.int32)

    pad = M_pad - M
    if pad:
        pred2d = jnp.pad(pred2d, ((0, pad), (0, 0)))
        # Padded rows must never count as valid.
        mgt2d = jnp.pad(mgt2d, ((0, pad), (0, 0)),
                        constant_values=mask_token_index - 1)
        ugt2d = jnp.pad(ugt2d, ((0, pad), (0, 0)))

    mti_arr = jnp.array([mask_token_index], dtype=jnp.int32)

    # VMEM budget: 2x double-buffered input tile + ~4x f32-sized temporaries.
    tile_in_bytes = tile_m * C * itemsize
    tile_f32_bytes = tile_m * C * 4
    vmem_limit = int(min(100 << 20,
                         max(32 << 20,
                             2 * tile_in_bytes + 4 * tile_f32_bytes + (2 << 20))))

    cost = pl.CostEstimate(
        flops=6 * M_pad * C,
        transcendentals=M_pad * C,
        bytes_accessed=M_pad * C * itemsize + 2 * M_pad * 4
                       + 2 * num_parallel * tile_m * 4,
    )

    nc = num_chunks  # closed over by index_maps

    loss_sum, valid_cnt = pl.pallas_call(
        _masked_ce_kernel,
        out_shape=(jax.ShapeDtypeStruct((num_parallel * tile_m, 1), jnp.float32),
                   jax.ShapeDtypeStruct((num_parallel * tile_m, 1), jnp.float32)),
        grid_spec=pltpu.PrefetchScalarGridSpec(
            num_scalar_prefetch=1,
            grid=(num_parallel, num_chunks),
            in_specs=[
                pl.BlockSpec((tile_m, C), lambda p, i, mti: (p * nc + i, 0)),
                pl.BlockSpec((tile_m, 1), lambda p, i, mti: (p * nc + i, 0)),
                pl.BlockSpec((tile_m, 1), lambda p, i, mti: (p * nc + i, 0)),
            ],
            out_specs=[
                pl.BlockSpec((tile_m, 1), lambda p, i, mti: (p, 0)),
                pl.BlockSpec((tile_m, 1), lambda p, i, mti: (p, 0)),
            ],
        ),
        compiler_params=pltpu.CompilerParams(
            dimension_semantics=("parallel", "arbitrary"),
            vmem_limit_bytes=vmem_limit),
        cost_estimate=cost,
    )(mti_arr, pred2d, mgt2d, ugt2d)

    s = jnp.sum(loss_sum)
    c = jnp.sum(valid_cnt)
    mean = s / jnp.maximum(c, 1.0)
    # reduction='mean' over valid rows; any NaN (incl. no valid rows) -> 10,
    # matching the PyTorch module's NaN guard (reference returns torch.tensor(10)).
    return jnp.where((c > 0) & jnp.logical_not(jnp.isnan(mean)),
                     mean, jnp.float32(10.0))


def _reference_jax(predictions, masked_gt, unmasked_gt, mask_token_index):
    B, N, C = predictions.shape
    logits = predictions.reshape(B * N, C).astype(jnp.float32)
    labels = unmasked_gt.reshape(B * N)
    valid = (masked_gt.reshape(B * N) == mask_token_index)
    lse = jax.nn.logsumexp(logits, axis=-1)
    picked = jnp.take_along_axis(logits, labels[:, None], axis=-1)[:, 0]
    per_row = lse - picked
    cnt = jnp.sum(valid)
    mean = jnp.sum(jnp.where(valid, per_row, 0.0)) / jnp.maximum(cnt, 1)
    return jnp.where(cnt > 0, mean, jnp.float32(10.0))


if __name__ == "__main__":
    MASK_TOKEN_INDEX = 5
    B, N, C = 2, 8, 32   # batch=2, seq=8, vocab=32

    key = jax.random.PRNGKey(0)
    k1, k2, k3 = jax.random.split(key, 3)
    predictions = jax.random.normal(k1, (B, N, C), dtype=jnp.float32)
    masked_gt = jax.random.randint(k2, (B, N), 0, C, dtype=jnp.int32)
    unmasked_gt = jax.random.randint(k3, (B, N), 0, C, dtype=jnp.int32)
    # Guarantee at least a couple of masked positions so the mean path is hit.
    masked_gt = masked_gt.at[0, 0].set(MASK_TOKEN_INDEX)
    masked_gt = masked_gt.at[1, 3].set(MASK_TOKEN_INDEX)

    loss = masked_cross_entropy_loss(
        predictions, masked_gt, unmasked_gt,
        mask_token_index=MASK_TOKEN_INDEX)
    loss = jax.block_until_ready(loss)

    ref = _reference_jax(predictions, masked_gt, unmasked_gt, MASK_TOKEN_INDEX)
    assert jnp.allclose(loss, ref, rtol=1e-5, atol=1e-5), (loss, ref)

    # Also exercise the no-valid-rows -> 10 path.
    none_masked = jnp.full((B, N), MASK_TOKEN_INDEX + 1, dtype=jnp.int32)
    loss_none = jax.block_until_ready(masked_cross_entropy_loss(
        predictions, none_masked, unmasked_gt,
        mask_token_index=MASK_TOKEN_INDEX))
    assert jnp.allclose(loss_none, 10.0), loss_none

    print("KERNEL_OK")
</pallas_src>

<mosaic_0001>
module attributes {stable_mosaic.version = 11 : i64} {
  func.func @_masked_ce_kernel(%arg0: i32, %arg1: i32, %arg2: memref<1xi32, #tpu.memory_space<smem>>, %arg3: memref<8x32xf32, #tpu.memory_space<vmem>>, %arg4: memref<8x1xi32, #tpu.memory_space<vmem>>, %arg5: memref<8x1xi32, #tpu.memory_space<vmem>>, %arg6: memref<8x1xf32, #tpu.memory_space<vmem>>, %arg7: memref<8x1xf32, #tpu.memory_space<vmem>>) attributes {dimension_semantics = [#tpu.dimension_semantics<parallel>, #tpu.dimension_semantics<arbitrary>], iteration_bounds = array<i64: 2, 1>, scalar_prefetch = 1 : i64, scratch_operands = 0 : i64, tpu.core_type = #tpu.core_type<tc>, window_params = [{transform_indices = @transform_0, window_bounds = array<i64: 8, 32>}, {transform_indices = @transform_1, window_bounds = array<i64: 8, 1>}, {transform_indices = @transform_2, window_bounds = array<i64: 8, 1>}, {transform_indices = @transform_3, window_bounds = array<i64: 8, 1>}, {transform_indices = @transform_4, window_bounds = array<i64: 8, 1>}]} {
    %c0_i32 = arith.constant 0 : i32
    %0 = arith.cmpi eq, %arg1, %c0_i32 : i32
    %1 = arith.extui %0 : i1 to i32
    %c0_i32_0 = arith.constant 0 : i32
    %2 = arith.cmpi ne, %1, %c0_i32_0 : i32
    scf.if %2 {
      %cst_18 = arith.constant 0.000000e+00 : f32
      %34 = vector.broadcast %cst_18 : f32 to vector<8x1xf32>
      %c0_19 = arith.constant 0 : index
      %c0_20 = arith.constant 0 : index
      %35 = vector.load %arg6[%c0_19, %c0_20] : memref<8x1xf32, #tpu.memory_space<vmem>>, vector<8x1xf32>
      tpu.vector_store %arg6[%c0_19, %c0_20], %34 {strides = array<i32>} : memref<8x1xf32, #tpu.memory_space<vmem>>, vector<8x1xf32>,
      %cst_21 = arith.constant 0.000000e+00 : f32
      %36 = vector.broadcast %cst_21 : f32 to vector<8x1xf32>
      %c0_22 = arith.constant 0 : index
      %c0_23 = arith.constant 0 : index
      %37 = vector.load %arg7[%c0_22, %c0_23] : memref<8x1xf32, #tpu.memory_space<vmem>>, vector<8x1xf32>
      tpu.vector_store %arg7[%c0_22, %c0_23], %36 {strides = array<i32>} : memref<8x1xf32, #tpu.memory_space<vmem>>, vector<8x1xf32>,
    } else {
    }
    %c0 = arith.constant 0 : index
    %c0_1 = arith.constant 0 : index
    %3 = vector.load %arg3[%c0, %c0_1] : memref<8x32xf32, #tpu.memory_space<vmem>>, vector<8x32xf32>
    %c0_2 = arith.constant 0 : index
    %c0_3 = arith.constant 0 : index
    %4 = vector.load %arg4[%c0_2, %c0_3] : memref<8x1xi32, #tpu.memory_space<vmem>>, vector<8x1xi32>
    %c0_4 = arith.constant 0 : index
    %c0_5 = arith.constant 0 : index
    %5 = vector.load %arg5[%c0_4, %c0_5] : memref<8x1xi32, #tpu.memory_space<vmem>>, vector<8x1xi32>
    %c0_6 = arith.constant 0 : index
    %6 = memref.load %arg2[%c0_6] : memref<1xi32, #tpu.memory_space<smem>>
    %7 = vector.broadcast %6 : i32 to vector<8x1xi32>
    %8 = arith.cmpi eq, %4, %7 : vector<8x1xi32>
    %9 = arith.extui %8 : vector<8x1xi1> to vector<8x1xi32>
    %10 = arith.sitofp %9 : vector<8x1xi32> to vector<8x1xf32>
    %cst = arith.constant dense<0xFF800000> : vector<8xf32>
    %11 = vector.multi_reduction <maximumf>, %3, %cst [1] : vector<8x32xf32> to vector<8xf32>
    %12 = vector.shape_cast %11 : vector<8xf32> to vector<8x1xf32>
    %13 = vector.broadcast %12 : vector<8x1xf32> to vector<8x32xf32>
    %14 = arith.subf %3, %13 : vector<8x32xf32>
    %15 = math.exp %14 : vector<8x32xf32>
    %cst_7 = arith.constant dense<0.000000e+00> : vector<8xf32>
    %16 = vector.multi_reduction <add>, %15, %cst_7 [1] : vector<8x32xf32> to vector<8xf32>
    %17 = vector.shape_cast %16 : vector<8xf32> to vector<8x1xf32>
    %18 = math.log %17 : vector<8x1xf32>
    %19 = tpu.iota {dimensions = array<i32: 1>} : vector<8x32xi32>
    %20 = vector.broadcast %5 : vector<8x1xi32> to vector<8x32xi32>
    %21 = arith.cmpi eq, %19, %20 : vector<8x32xi32>
    %cst_8 = arith.constant 0.000000e+00 : f32
    %22 = vector.broadcast %cst_8 : f32 to vector<8x32xf32>
    %23 = arith.select %21, %14, %22 : vector<8x32xi1>, vector<8x32xf32>
    %cst_9 = arith.constant dense<0.000000e+00> : vector<8xf32>
    %24 = vector.multi_reduction <add>, %23, %cst_9 [1] : vector<8x32xf32> to vector<8xf32>
    %25 = vector.shape_cast %24 : vector<8xf32> to vector<8x1xf32>
    %26 = arith.subf %18, %25 : vector<8x1xf32>
    %c0_10 = arith.constant 0 : index
    %c0_11 = arith.constant 0 : index
    %27 = vector.load %arg6[%c0_10, %c0_11] : memref<8x1xf32, #tpu.memory_space<vmem>>, vector<8x1xf32>
    %28 = arith.mulf %26, %10 : vector<8x1xf32>
    %29 = arith.addf %27, %28 : vector<8x1xf32>
    %c0_12 = arith.constant 0 : index
    %c0_13 = arith.constant 0 : index
    %30 = vector.load %arg6[%c0_12, %c0_13] : memref<8x1xf32, #tpu.memory_space<vmem>>, vector<8x1xf32>
    tpu.vector_store %arg6[%c0_12, %c0_13], %29 {strides = array<i32>} : memref<8x1xf32, #tpu.memory_space<vmem>>, vector<8x1xf32>,
    %c0_14 = arith.constant 0 : index
    %c0_15 = arith.constant 0 : index
    %31 = vector.load %arg7[%c0_14, %c0_15] : memref<8x1xf32, #tpu.memory_space<vmem>>, vector<8x1xf32>
    %32 = arith.addf %31, %10 : vector<8x1xf32>
    %c0_16 = arith.constant 0 : index
    %c0_17 = arith.constant 0 : index
    %33 = vector.load %arg7[%c0_16, %c0_17] : memref<8x1xf32, #tpu.memory_space<vmem>>, vector<8x1xf32>
    tpu.vector_store %arg7[%c0_16, %c0_17], %32 {strides = array<i32>} : memref<8x1xf32, #tpu.memory_space<vmem>>, vector<8x1xf32>,
    return
  }
  func.func @transform_0(%arg0: i32, %arg1: i32, %arg2: memref<1xi32, #tpu.memory_space<smem>>) -> (i32, i32) {
    %c1_i32 = arith.constant 1 : i32
    %0 = arith.muli %arg0, %c1_i32 : i32
    %1 = arith.addi %0, %arg1 : i32
    %c0_i32 = arith.constant 0 : i32
    %c0_i32_0 = arith.constant 0 : i32
    return %1, %c0_i32 : i32, i32
  }
  func.func @transform_1(%arg0: i32, %arg1: i32, %arg2: memref<1xi32, #tpu.memory_space<smem>>) -> (i32, i32) {
    %c1_i32 = arith.constant 1 : i32
    %0 = arith.muli %arg0, %c1_i32 : i32
    %1 = arith.addi %0, %arg1 : i32
    %c0_i32 = arith.constant 0 : i32
    %c0_i32_0 = arith.constant 0 : i32
    return %1, %c0_i32 : i32, i32
  }
  func.func @transform_2(%arg0: i32, %arg1: i32, %arg2: memref<1xi32, #tpu.memory_space<smem>>) -> (i32, i32) {
    %c1_i32 = arith.constant 1 : i32
    %0 = arith.muli %arg0, %c1_i32 : i32
    %1 = arith.addi %0, %arg1 : i32
    %c0_i32 = arith.constant 0 : i32
    %c0_i32_0 = arith.constant 0 : i32
    return %1, %c0_i32 : i32, i32
  }
  func.func @transform_3(%arg0: i32, %arg1: i32, %arg2: memref<1xi32, #tpu.memory_space<smem>>) -> (i32, i32) {
    %c0_i32 = arith.constant 0 : i32
    %c0_i32_0 = arith.constant 0 : i32
    return %arg0, %c0_i32 : i32, i32
  }
  func.func @transform_4(%arg0: i32, %arg1: i32, %arg2: memref<1xi32, #tpu.memory_space<smem>>) -> (i32, i32) {
    %c0_i32 = arith.constant 0 : i32
    %c0_i32_0 = arith.constant 0 : i32
    return %arg0, %c0_i32 : i32, i32
  }
}

</mosaic_0001>

<llo_original>
// kernel: tpu_custom_call.1
$region0: #{tpu_custom_call.1}
  #allocation0 [shape = 'u32[]', space=smem, size = 0x4, offset = 0x4, fixed_abs, tag = 'smem constant byte address 0x4 - core index']
  #allocation1 [shape = 'u32[144,128]{1,0:T(1,128)}', space=vmem, size = 0x12000, scoped, tag = 'internal scratch']
  #allocation2 [shape = 's32[1]{0}', space=sflag, size = 0x4, scoped, tag = 'scoped memory for tpu_custom_call.1']
  #allocation3 [shape = 's32[1]{0:T(128)S(6)}', space=smem, size = 0x200, scoped, tag = 'prefetched SMEM operand 0']
  %s0 = inlined_call_operand.<no memory space> [shape: s32[1], index: 0, kind: input, shape index: {}]
  %s1 = inlined_call_operand.vmem [shape: f32[16,32], index: 1, kind: input, shape index: {}]
  %s2 = inlined_call_operand.vmem [shape: s32[16,1], index: 2, kind: input, shape index: {}]
  %s3 = inlined_call_operand.vmem [shape: s32[16,1], index: 3, kind: input, shape index: {}]
  %s4 = inlined_call_operand.vmem [shape: f32[16,1], index: 4, kind: output, shape index: {0}]
  %s5 = inlined_call_operand.vmem [shape: f32[16,1], index: 5, kind: output, shape index: {1}]
  %6 = xla_tuple %s4, %s5
  %s7 = sld [smem:[#allocation0]]
  $region57: #{tpu_custom_call.1} parent=0
    _
  %s9 = ssub.s32 1, %s7
  %s10 = scalar_select 0, %s9, %s7
  %11 = sst [smem:[#allocation3]] %s0
  loop: start=0, step=1, limit=4
  $region2: #{tpu_custom_call.1} parent=0 // loop_pre_header
    _
  $region3: #{tpu_custom_call.1} parent=0 // loop_header
    %s13 = sphi 0, %s17
    %p14 = scmp.ge.s32.totalorder %s13, 4
    %s20 = sphi 0, %s32
    %s21 = sphi 0, %s28
    %s22 = sphi 0, %s20
    %s23 = sphi 0, %s21
    %s24 = sphi 0, %s22
    %s25 = sphi 0, %s23
    %s37 = sphi 0, %s39
    %s40 = sphi 0, %s37
    %s41 = sphi 0, %s40
    %s57 = sphi 0, %s41
    %s65 = sphi 0, %s67
    %s68 = sphi 0, %s65
    %s69 = sphi 0, %s68
    %s85 = sphi 0, %s69
    %s93 = sphi 0, %s95
    %s96 = sphi 0, %s93
    %s97 = sphi 0, %s96
    %s113 = sphi 0, %s97
    %s119 = sphi 0, %s121
    %s122 = sphi 0, %s119
    %s123 = sphi 0, %s122
    %s139 = sphi 0, %s123
    %s145 = sphi 0, %s147
    %s148 = sphi 0, %s145
    %s149 = sphi 0, %s148
    %s165 = sphi 0, %s149
  $region4: #{tpu_custom_call.1} parent=0 // loop_header_branch
    %16 = sbr.rel (%p14) target = $region8
  $region5: #{tpu_custom_call.1} parent=0 // loop_body
    %s18 = ssub.s32 %s13, 1
    %s19 = ssub.s32 %s13, 2
    %s26 = sadd.s32 1, %s21
    %p27 = scmp.ge.s32.totalorder %s26, 1
    %s28 = scalar_select %p27, 0, %s26
    %s29 = sadd.s32 1, %s20
    %s30 = scalar_select %p27, %s29, %s20
    %p31 = scmp.ge.s32.totalorder %s30, 2
    %s32 = scalar_select %p31, 0, %s30
    %s33 = sadd.s32 %s20, %s21
    %s34 = sadd.s32 %s32, %s28
    %s35 = ssub.s32 %s33, %s34
    %p36 = scmp.eq.s32.totalorder %s35, 0
    %s38 = sadd.s32 %s37, 1
    %s39 = scalar_select %p36, %s37, %s38
    %p42 = pneg %p36
    %p43 = scmp.eq.s32.totalorder %s13, 1
    %p44 = por %p42, %p43
    %p45 = scmp.ne.s32.totalorder %s37, %s40
    %p46 = scmp.eq.s32.totalorder %s13, 0
    %p47 = por %p45, %p46
    %p48 = scmp.ne.s32.totalorder %s37, %s40
    %p49 = scmp.eq.s32.totalorder %s18, 1
    %p50 = por %p48, %p49
    %p51 = scmp.ne.s32.totalorder %s40, %s41
    %p52 = scmp.eq.s32.totalorder %s18, 0
    %p53 = por %p51, %p52
    %p54 = scmp.ne.s32.totalorder %s40, %s41
    %p55 = scmp.eq.s32.totalorder %s19, 1
    %p56 = por %p54, %p55
    %p58 = scmp.ne.s32.totalorder %s41, %s57
    %p59 = scmp.eq.s32.totalorder %s19, 0
    %p60 = por %p58, %p59
    %s61 = sadd.s32 %s20, %s21
    %s62 = sadd.s32 %s32, %s28
    %s63 = ssub.s32 %s61, %s62
    %p64 = scmp.eq.s32.totalorder %s63, 0
    %s66 = sadd.s32 %s65, 1
    %s67 = scalar_select %p64, %s65, %s66
    %p70 = pneg %p64
    %p71 = scmp.eq.s32.totalorder %s13, 1
    %p72 = por %p70, %p71
    %p73 = scmp.ne.s32.totalorder %s65, %s68
    %p74 = scmp.eq.s32.totalorder %s13, 0
    %p75 = por %p73, %p74
    %p76 = scmp.ne.s32.totalorder %s65, %s68
    %p77 = scmp.eq.s32.totalorder %s18, 1
    %p78 = por %p76, %p77
    %p79 = scmp.ne.s32.totalorder %s68, %s69
    %p80 = scmp.eq.s32.totalorder %s18, 0
    %p81 = por %p79, %p80
    %p82 = scmp.ne.s32.totalorder %s68, %s69
    %p83 = scmp.eq.s32.totalorder %s19, 1
    %p84 = por %p82, %p83
    %p86 = scmp.ne.s32.totalorder %s69, %s85
    %p87 = scmp.eq.s32.totalorder %s19, 0
    %p88 = por %p86, %p87
    %s89 = sadd.s32 %s20, %s21
    %s90 = sadd.s32 %s32, %s28
    %s91 = ssub.s32 %s89, %s90
    %p92 = scmp.eq.s32.totalorder %s91, 0
    %s94 = sadd.s32 %s93, 1
    %s95 = scalar_select %p92, %s93, %s94
    %p98 = pneg %p92
    %p99 = scmp.eq.s32.totalorder %s13, 1
    %p100 = por %p98, %p99
    %p101 = scmp.ne.s32.totalorder %s93, %s96
    %p102 = scmp.eq.s32.totalorder %s13, 0
    %p103 = por %p101, %p102
    %p104 = scmp.ne.s32.totalorder %s93, %s96
    %p105 = scmp.eq.s32.totalorder %s18, 1
    %p106 = por %p104, %p105
    %p107 = scmp.ne.s32.totalorder %s96, %s97
    %p108 = scmp.eq.s32.totalorder %s18, 0
    %p109 = por %p107, %p108
    %p110 = scmp.ne.s32.totalorder %s96, %s97
    %p111 = scmp.eq.s32.totalorder %s19, 1
    %p112 = por %p110, %p111
    %p114 = scmp.ne.s32.totalorder %s97, %s113
    %p115 = scmp.eq.s32.totalorder %s19, 0
    %p116 = por %p114, %p115
    %s117 = ssub.s32 %s20, %s32
    %p118 = scmp.eq.s32.totalorder %s117, 0
    %s120 = sadd.s32 %s119, 1
    %s121 = scalar_select %p118, %s119, %s120
    %p124 = pneg %p118
    %p125 = scmp.eq.s32.totalorder %s13, 1
    %p126 = por %p124, %p125
    %p127 = scmp.ne.s32.totalorder %s119, %s122
    %p128 = scmp.eq.s32.totalorder %s13, 0
    %p129 = por %p127, %p128
    %p130 = scmp.ne.s32.totalorder %s119, %s122
    %p131 = scmp.eq.s32.totalorder %s18, 1
    %p132 = por %p130, %p131
    %p133 = scmp.ne.s32.totalorder %s122, %s123
    %p134 = scmp.eq.s32.totalorder %s18, 0
    %p135 = por %p133, %p134
    %p136 = scmp.ne.s32.totalorder %s122, %s123
    %p137 = scmp.eq.s32.totalorder %s19, 1
    %p138 = por %p136, %p137
    %p140 = scmp.ne.s32.totalorder %s123, %s139
    %p141 = scmp.eq.s32.totalorder %s19, 0
    %p142 = por %p140, %p141
    %s143 = ssub.s32 %s20, %s32
    %p144 = scmp.eq.s32.totalorder %s143, 0
    %s146 = sadd.s32 %s145, 1
    %s147 = scalar_select %p144, %s145, %s146
    %p150 = pneg %p144
    %p151 = scmp.eq.s32.totalorder %s13, 1
    %p152 = por %p150, %p151
    %p153 = scmp.ne.s32.totalorder %s145, %s148
    %p154 = scmp.eq.s32.totalorder %s13, 0
    %p155 = por %p153, %p154
    %p156 = scmp.ne.s32.totalorder %s145, %s148
    %p157 = scmp.eq.s32.totalorder %s18, 1
    %p158 = por %p156, %p157
    %p159 = scmp.ne.s32.totalorder %s148, %s149
    %p160 = scmp.eq.s32.totalorder %s18, 0
    %p161 = por %p159, %p160
    %p162 = scmp.ne.s32.totalorder %s148, %s149
    %p163 = scmp.eq.s32.totalorder %s19, 1
    %p164 = por %p162, %p163
    %p166 = scmp.ne.s32.totalorder %s149, %s165
    %p167 = scmp.eq.s32.totalorder %s19, 0
    %p168 = por %p166, %p167
    %p169 = scmp.le.s32.totalorder 1, %s13
    %p170 = scmp.lt.s32.totalorder %s13, 3
    %p171 = pnand %p169, %p170
    %p172 = pneg %p171
    // Predicated region
    $region9: #{tpu_custom_call.1} parent=5 // pred_check
      _
    $region10: #{tpu_custom_call.1} parent=5 // pred_check_branch
      %174 = sbr.rel (%p171) target = $region12
    $region11: #{tpu_custom_call.1} parent=5 // pred_region
      %s175 = ssub.s32 %s13, 1
    $region12: #{tpu_custom_call.1} parent=5 // pred_fallthru
      _
    %p176 = scmp.lt.s32.totalorder %s13, 2
    // Predicated region
    $region13: #{tpu_custom_call.1} parent=5 // pred_check
      %p177 = pneg %p176
    $region14: #{tpu_custom_call.1} parent=5 // pred_check_branch
      %179 = sbr.rel (%p177) target = $region16
    $region15: #{tpu_custom_call.1} parent=5 // pred_region
      // Predicated region
      $region17: #{tpu_custom_call.1} parent=15 // pred_check
        %p180 = pneg %p47
      $region18: #{tpu_custom_call.1} parent=15 // pred_check_branch
        %182 = sbr.rel (%p180) target = $region20
      $region19: #{tpu_custom_call.1} parent=15 // pred_region
        %s183 = sadd.s32 %s20, %s21
        %p184 = scmp.lt.s32.totalorder %s183, 1
        %s185 = scalar_select %p184, %s183, 1
        %s186 = smul.addr %s185, 8
        %s187 = scalar_lea.vmem %s1, %s186
        %s188 = sadd.s32 %s20, %s21
      $region20: #{tpu_custom_call.1} parent=15 // pred_fallthru
        _
      // Predicated region
      $region21: #{tpu_custom_call.1} parent=15 // pred_check
        %p189 = pneg %p75
      $region22: #{tpu_custom_call.1} parent=15 // pred_check_branch
        %191 = sbr.rel (%p189) target = $region24
      $region23: #{tpu_custom_call.1} parent=15 // pred_region
        %s192 = sadd.s32 %s20, %s21
        %p193 = scmp.lt.s32.totalorder %s192, 1
        %s194 = scalar_select %p193, %s192, 1
        %s195 = smul.addr %s194, 8
        %s196 = scalar_lea.vmem %s2, %s195
        %s197 = sadd.s32 %s20, %s21
      $region24: #{tpu_custom_call.1} parent=15 // pred_fallthru
        _
      // Predicated region
      $region25: #{tpu_custom_call.1} parent=15 // pred_check
        %p198 = pneg %p103
      $region26: #{tpu_custom_call.1} parent=15 // pred_check_branch
        %200 = sbr.rel (%p198) target = $region28
      $region27: #{tpu_custom_call.1} parent=15 // pred_region
        %s201 = sadd.s32 %s20, %s21
        %p202 = scmp.lt.s32.totalorder %s201, 1
        %s203 = scalar_select %p202, %s201, 1
        %s204 = smul.addr %s203, 8
        %s205 = scalar_lea.vmem %s3, %s204
        %s206 = sadd.s32 %s20, %s21
      $region28: #{tpu_custom_call.1} parent=15 // pred_fallthru
        _
    $region16: #{tpu_custom_call.1} parent=5 // pred_fallthru
      _
    %p207 = scmp.le.s32.totalorder 1, %s13
    %p208 = scmp.lt.s32.totalorder %s13, 3
    %p209 = pnand %p207, %p208
    %p210 = pneg %p209
    // Predicated region
    $region29: #{tpu_custom_call.1} parent=5 // pred_check
      _
    $region30: #{tpu_custom_call.1} parent=5 // pred_check_branch
      %212 = sbr.rel (%p209) target = $region32
    $region31: #{tpu_custom_call.1} parent=5 // pred_region
      %s213 = ssub.s32 %s13, 1
      %s214 = sadd.s32 %s22, %s23
      %p215 = scmp.lt.s32.totalorder %s214, 1
      %s216 = scalar_select %p215, %s214, 1
      %s217 = smul.addr %s216, 8
      %s218 = scalar_lea.vmem %s1, %s217
      %p219 = pneg %p53
      %p220 = pneg %p50
      %s221 = sadd.s32 %s22, %s23
      %p222 = scmp.lt.s32.totalorder %s221, 1
      %s223 = scalar_select %p222, %s221, 1
      %s224 = smul.addr %s223, 8
      %s225 = scalar_lea.vmem %s2, %s224
      %p226 = pneg %p81
      %p227 = pneg %p78
      %s228 = sadd.s32 %s22, %s23
      %p229 = scmp.lt.s32.totalorder %s228, 1
      %s230 = scalar_select %p229, %s228, 1
      %s231 = smul.addr %s230, 8
      %s232 = scalar_lea.vmem %s3, %s231
      %p233 = pneg %p109
      %p234 = pneg %p106
      %p235 = pneg %p135
      %p236 = pneg %p132
      %p237 = scmp.lt.s32.totalorder %s22, 1
      %s238 = scalar_select %p237, %s22, 1
      %s239 = smul.addr %s238, 8
      %s240 = scalar_lea.vmem %s4, %s239
      %p241 = pneg %p161
      %p242 = pneg %p158
      %p243 = scmp.lt.s32.totalorder %s22, 1
      %s244 = scalar_select %p243, %s22, 1
      %s245 = smul.addr %s244, 8
      %s246 = scalar_lea.vmem %s5, %s245
      %s247 = sadd.s32 %s22, %s23
      %p248 = scmp.lt.s32.totalorder %s247, 1
      %s249 = scalar_select %p248, %s247, 1
      %s250 = smul.addr %s249, 8
      %s251 = scalar_lea.vmem %s1, %s250
      %s252 = sadd.s32 %s22, %s23
      %s253 = sadd.s32 %s22, %s23
      %p254 = scmp.lt.s32.totalorder %s253, 1
      %s255 = scalar_select %p254, %s253, 1
      %s256 = smul.addr %s255, 8
      %s257 = scalar_lea.vmem %s2, %s256
      %s258 = sadd.s32 %s22, %s23
      %s259 = sadd.s32 %s22, %s23
      %p260 = scmp.lt.s32.totalorder %s259, 1
      %s261 = scalar_select %p260, %s259, 1
      %s262 = smul.addr %s261, 8
      %s263 = scalar_lea.vmem %s3, %s262
      %s264 = sadd.s32 %s22, %s23
      %p265 = scmp.lt.s32.totalorder %s22, 1
      %s266 = scalar_select %p265, %s22, 1
      %s267 = smul.addr %s266, 8
      %s268 = scalar_lea.vmem %s4, %s267
      %p269 = scmp.lt.s32.totalorder %s22, 1
      %s270 = scalar_select %p269, %s22, 1
      %s271 = smul.addr %s270, 8
      %s272 = scalar_lea.vmem %s5, %s271
      %p273 = scmp.eq.s32.totalorder %s23, 0
      // Predicated region
      $region33: #{tpu_custom_call.1} parent=31 // pred_check
        %p274 = pneg %p273
      $region34: #{tpu_custom_call.1} parent=31 // pred_check_branch
        %276 = sbr.rel (%p274) target = $region36
      $region35: #{tpu_custom_call.1} parent=31 // pred_region
        %vm277 = vcmask 7168
        %278 = vst.msk [vmem:[%s268] sm:$0xff] %vm277, 0.0
        %279 = vst.msk [vmem:[%s272] sm:$0xff] %vm277, 0.0
      $region36: #{tpu_custom_call.1} parent=31 // pred_fallthru
        _
      %v280 = vld [vmem:[%s251] sm:$0xff]
      %v281 = vld [vmem:[%s257] sm:$0xff]
      %v282 = vld [vmem:[%s263] sm:$0xff]
      %s283 = sld [smem:[#allocation3]]
      %v284 = vstv %s283
      %vm285 = vcmp.eq.s32.totalorder %v281, %v284
      %v286 = vsel %vm285, 1, 0
      %v287 = vcvt.s32.f32 %v286
      %vm288 = vcmask 261120
      %v289 = vsel %vm288, %v280, -inf
      %290 = vmax.xlane.f32.xlu0 %v289
      %v291 = vpop.xlane.xlu0 %290
      %v292 = vsub.f32 %v280, %v291
      %v293 = vmul.f32 %v292, 1.442695
      %v294 = vpow.pop %v293
      %v295 = vsel %vm288, %v294, 0.0
      %296 = vadd.xlane.f32.xlu0 %v295
      %v297 = vpop.xlane.xlu0 %296
      %v298 = vlog2.pop %v297
      %v299 = vmul.f32 %v298, 0.6931472
      %v300 = vlaneseq
      %v301 = vand.u32 %v300, 127
      %302 = vset.pattern.permute.xlu0 0
      %303 = vperm.xlu0 %302, %v282
      %v304 = vpop.permute.xlu0 %303
      %vm305 = vcmp.eq.s32.totalorder %v301, %v304
      %v306 = vsel %vm305, %v292, 0.0
      %v307 = vsel %vm288, %v306, 0.0
      %308 = vadd.xlane.f32.xlu0 %v307
      %v309 = vpop.xlane.xlu0 %308
      %v310 = vsub.f32 %v299, %v309
      %v311 = vld [vmem:[%s268] sm:$0xff]
      %v312 = vmul.f32 %v310, %v287
      %v313 = vadd.f32 %v311, %v312
      %vm314 = vcmask 7168
      %315 = vst.msk [vmem:[%s268] sm:$0xff] %vm314, %v313
      %v316 = vld [vmem:[%s272] sm:$0xff]
      %v317 = vadd.f32 %v316, %v287
      %318 = vst.msk [vmem:[%s272] sm:$0xff] %vm314, %v317
      %p319 = scmp.lt.s32.totalorder %s22, 1
      %s320 = scalar_select %p319, %s22, 1
      %s321 = smul.addr %s320, 8
      %s322 = scalar_lea.vmem %s4, %s321
      %p323 = scmp.lt.s32.totalorder %s22, 1
      %s324 = scalar_select %p323, %s22, 1
      %s325 = smul.addr %s324, 8
      %s326 = scalar_lea.vmem %s5, %s325
      // Predicated region
      $region37: #{tpu_custom_call.1} parent=31 // pred_check
        %p327 = pneg %p132
      $region38: #{tpu_custom_call.1} parent=31 // pred_check_branch
        %329 = sbr.rel (%p327) target = $region40
      $region39: #{tpu_custom_call.1} parent=31 // pred_region
        _
      $region40: #{tpu_custom_call.1} parent=31 // pred_fallthru
        _
      // Predicated region
      $region41: #{tpu_custom_call.1} parent=31 // pred_check
        %p330 = pneg %p158
      $region42: #{tpu_custom_call.1} parent=31 // pred_check_branch
        %332 = sbr.rel (%p330) target = $region44
      $region43: #{tpu_custom_call.1} parent=31 // pred_region
        _
      $region44: #{tpu_custom_call.1} parent=31 // pred_fallthru
        _
    $region32: #{tpu_custom_call.1} parent=5 // pred_fallthru
      _
    %p333 = scmp.le.s32.totalorder 2, %s13
    // Predicated region
    $region45: #{tpu_custom_call.1} parent=5 // pred_check
      %p334 = pneg %p333
    $region46: #{tpu_custom_call.1} parent=5 // pred_check_branch
      %336 = sbr.rel (%p334) target = $region48
    $region47: #{tpu_custom_call.1} parent=5 // pred_region
      %s337 = ssub.s32 %s13, 2
      // Predicated region
      $region49: #{tpu_custom_call.1} parent=47 // pred_check
        %p338 = pneg %p138
      $region50: #{tpu_custom_call.1} parent=47 // pred_check_branch
        %340 = sbr.rel (%p338) target = $region52
      $region51: #{tpu_custom_call.1} parent=47 // pred_region
        %p341 = scmp.lt.s32.totalorder %s24, 1
        %s342 = scalar_select %p341, %s24, 1
        %s343 = smul.addr %s342, 8
        %s344 = scalar_lea.vmem %s4, %s343
      $region52: #{tpu_custom_call.1} parent=47 // pred_fallthru
        _
      // Predicated region
      $region53: #{tpu_custom_call.1} parent=47 // pred_check
        %p345 = pneg %p164
      $region54: #{tpu_custom_call.1} parent=47 // pred_check_branch
        %347 = sbr.rel (%p345) target = $region56
      $region55: #{tpu_custom_call.1} parent=47 // pred_region
        %p348 = scmp.lt.s32.totalorder %s24, 1
        %s349 = scalar_select %p348, %s24, 1
        %s350 = smul.addr %s349, 8
        %s351 = scalar_lea.vmem %s5, %s350
      $region56: #{tpu_custom_call.1} parent=47 // pred_fallthru
        _
    $region48: #{tpu_custom_call.1} parent=5 // pred_fallthru
      _
  $region6: #{tpu_custom_call.1} parent=0 // loop_footer
    %s17 = sadd.s32 1, %s13
  $region7: #{tpu_custom_call.1} parent=0 // loop_footer_branch
    %12 = sbr.rel target = $region3
  $region8: #{tpu_custom_call.1} parent=0 // loop_exit
    _

</llo_original>
